<compile_context>
chip_gen: v7x
topology: tpu7x:2x2x1
jax: 0.10.0
libtpu: 0.0.40
codegen_flags: <defaults>
</compile_context>

<pallas_src>
import jax
import jax.numpy as jnp
from jax.experimental import pallas as pl
from jax.experimental.pallas import tpu as pltpu

IN_F = 784      # 28*28
HID = 32
OUT_F = 10
OUT_PAD = 128   # lane-dense padded output width


def _round_up(x, m):
    return (x + m - 1) // m * m


def _mlp_graft_kernel(x_ref,
                      w1_ref, b1_ref,
                      nm2_ref, sm2_ref, cm2_ref,
                      w3_ref, b3_ref,
                      nm4_ref, sm4_ref, cm4_ref,
                      w5_ref, b5_ref,
                      o_ref):
    """One batch tile of the full forward pass.

    x_ref: (TILE_B, 784) bf16; weight matrices bf16; biases / masked-relu
    params f32. All matmuls accumulate in f32; elementwise math stays f32
    (no bf16 VPU dependence on v5e).
    """
    x = x_ref[...]                                                    # (TB, 784) bf16

    # layer1: Linear(784 -> 32)
    h = jnp.dot(x, w1_ref[...], preferred_element_type=jnp.float32) + b1_ref[...]

    # linear_masked_relu2: relu(h)*(1-m) + h*(s*m) + (c*m)   (params pre-folded)
    h = jnp.maximum(h, 0.0) * nm2_ref[...] + h * sm2_ref[...] + cm2_ref[...]

    # layer3: Linear(32 -> 32)
    h = jnp.dot(h.astype(jnp.bfloat16), w3_ref[...],
                preferred_element_type=jnp.float32) + b3_ref[...]

    # linear_masked_relu4
    h = jnp.maximum(h, 0.0) * nm4_ref[...] + h * sm4_ref[...] + cm4_ref[...]

    # layer5: Linear(32 -> 10), padded to 128 lanes for unmasked stores
    o_ref[...] = (jnp.dot(h.astype(jnp.bfloat16), w5_ref[...],
                          preferred_element_type=jnp.float32)
                  + b5_ref[...]).astype(o_ref.dtype)


def mnist_2_32_graft_forward(x_nchw, params, tile_b=512):
    """x_nchw: (B, 1, 28, 28) float32. Returns (B, 10) float32."""
    B = x_nchw.shape[0]
    x_flat = x_nchw.reshape(B, -1)                                    # (B, 784), torch-identical flatten

    (w1, b1, m2, s2, c2, w3, b3, m4, s4, c4, w5, b5) = params

    # Pre-fold masked-relu params:  out = relu(h)*(1-m) + h*(s*m) + (c*m)
    nm2, sm2, cm2 = 1.0 - m2, s2 * m2, c2 * m2
    nm4, sm4, cm4 = 1.0 - m4, s4 * m4, c4 * m4

    # Lane-dense padding of the final Linear (10 -> 128 output lanes).
    w5p = jnp.zeros((HID, OUT_PAD), jnp.float32).at[:, :OUT_F].set(w5)
    b5p = jnp.zeros((1, OUT_PAD), jnp.float32).at[:, :OUT_F].set(b5)

    # bf16 for the HBM-heavy operands (activations + weight matrices);
    # biases and masked-relu params stay f32, matmuls accumulate in f32.
    x_bf = x_flat.astype(jnp.bfloat16)
    w1_bf = w1.astype(jnp.bfloat16)
    w3_bf = w3.astype(jnp.bfloat16)
    w5_bf = w5p.astype(jnp.bfloat16)

    # Batch tiling: big tiles for large B (pipelined, near HBM roofline),
    # shrink + pad for tiny batches. Keep tile a multiple of 16 (bf16 sublanes).
    tile_b = min(tile_b, _round_up(B, 16))
    Bp = _round_up(B, tile_b)
    if Bp != B:
        x_bf = jnp.pad(x_bf, ((0, Bp - B), (0, 0)))

    grid = (Bp // tile_b,)
    const = lambda i: (0, 0)   # weights resident in VMEM across all batch tiles

    out = pl.pallas_call(
        _mlp_graft_kernel,
        out_shape=jax.ShapeDtypeStruct((Bp, OUT_PAD), jnp.float32),
        grid=grid,
        in_specs=[
            pl.BlockSpec((tile_b, IN_F), lambda i: (i, 0)),   # x (streamed)
            pl.BlockSpec((IN_F, HID), const),                 # w1
            pl.BlockSpec((1, HID), const),                    # b1
            pl.BlockSpec((1, HID), const),                    # (1-m2)
            pl.BlockSpec((1, HID), const),                    # s2*m2
            pl.BlockSpec((1, HID), const),                    # c2*m2
            pl.BlockSpec((HID, HID), const),                  # w3
            pl.BlockSpec((1, HID), const),                    # b3
            pl.BlockSpec((1, HID), const),                    # (1-m4)
            pl.BlockSpec((1, HID), const),                    # s4*m4
            pl.BlockSpec((1, HID), const),                    # c4*m4
            pl.BlockSpec((HID, OUT_PAD), const),              # w5 (padded)
            pl.BlockSpec((1, OUT_PAD), const),                # b5 (padded)
        ],
        out_specs=pl.BlockSpec((tile_b, OUT_PAD), lambda i: (i, 0)),
        compiler_params=pltpu.CompilerParams(
            dimension_semantics=("parallel",)),
    )(x_bf, w1_bf, b1, nm2, sm2, cm2, w3_bf, b3, nm4, sm4, cm4, w5_bf, b5p)

    return out[:B, :OUT_F]


def init_params(key, v=1.0, b=0.0):
    """Deterministic parameter init mimicking nn.Linear defaults (uniform ±1/sqrt(fan_in)).
    Weights are stored as (in_features, out_features)."""
    def linear(key, fan_in, fan_out):
        kw, kb = jax.random.split(key)
        bound = 1.0 / jnp.sqrt(fan_in)
        w = jax.random.uniform(kw, (fan_in, fan_out), jnp.float32, -bound, bound)
        bias = jax.random.uniform(kb, (1, fan_out), jnp.float32, -bound, bound)
        return w, bias

    k1, k3, k5 = jax.random.split(key, 3)
    w1, b1 = linear(k1, IN_F, HID)
    w3, b3 = linear(k3, HID, HID)
    w5, b5 = linear(k5, HID, OUT_F)

    # LinearMaskedRelu buffers/parameters: mask=0, slope=v, bias=b (size 32 each)
    m2 = jnp.zeros((1, HID), jnp.float32)
    s2 = jnp.full((1, HID), v, jnp.float32)
    c2 = jnp.full((1, HID), b, jnp.float32)
    m4 = jnp.zeros((1, HID), jnp.float32)
    s4 = jnp.full((1, HID), v, jnp.float32)
    c4 = jnp.full((1, HID), b, jnp.float32)

    return (w1, b1, m2, s2, c2, w3, b3, m4, s4, c4, w5, b5)


def _reference_forward(x_nchw, params):
    """Pure-JAX f32 reference for sanity checking."""
    (w1, b1, m2, s2, c2, w3, b3, m4, s4, c4, w5, b5) = params
    x = x_nchw.reshape(x_nchw.shape[0], -1)
    h = x @ w1 + b1
    h = jnp.maximum(h, 0.0) * (1.0 - m2) + (h * s2 + c2) * m2
    h = h @ w3 + b3
    h = jnp.maximum(h, 0.0) * (1.0 - m4) + (h * s4 + c4) * m4
    return h @ w5 + b5


if __name__ == "__main__":
    key = jax.random.PRNGKey(0)
    k_x, k_p = jax.random.split(key)

    B = 2
    x = jax.random.normal(k_x, (B, 1, 28, 28), jnp.float32)   # NCHW MNIST-like input
    params = init_params(k_p, v=1.0, b=0.0)

    out = mnist_2_32_graft_forward(x, params)
    out = jax.block_until_ready(out)

    ref = _reference_forward(x, params)
    assert out.shape == (B, 10)
    # bf16 activations/weights in the kernel -> looser tolerance vs f32 reference
    assert jnp.allclose(out, ref, atol=2e-2, rtol=2e-2), "mismatch vs reference"

    print("KERNEL_OK")
</pallas_src>

<mosaic_0001>
module attributes {stable_mosaic.version = 11 : i64} {
  func.func @_mlp_graft_kernel(%arg0: i32, %arg1: memref<16x784xbf16, #tpu.memory_space<vmem>>, %arg2: memref<784x32xbf16, #tpu.memory_space<vmem>>, %arg3: memref<1x32xf32, #tpu.memory_space<vmem>>, %arg4: memref<1x32xf32, #tpu.memory_space<vmem>>, %arg5: memref<1x32xf32, #tpu.memory_space<vmem>>, %arg6: memref<1x32xf32, #tpu.memory_space<vmem>>, %arg7: memref<32x32xbf16, #tpu.memory_space<vmem>>, %arg8: memref<1x32xf32, #tpu.memory_space<vmem>>, %arg9: memref<1x32xf32, #tpu.memory_space<vmem>>, %arg10: memref<1x32xf32, #tpu.memory_space<vmem>>, %arg11: memref<1x32xf32, #tpu.memory_space<vmem>>, %arg12: memref<32x128xbf16, #tpu.memory_space<vmem>>, %arg13: memref<1x128xf32, #tpu.memory_space<vmem>>, %arg14: memref<16x128xf32, #tpu.memory_space<vmem>>) attributes {dimension_semantics = [#tpu.dimension_semantics<parallel>], iteration_bounds = array<i64: 1>, scalar_prefetch = 0 : i64, scratch_operands = 0 : i64, tpu.core_type = #tpu.core_type<tc>, window_params = [{transform_indices = @transform_0, window_bounds = array<i64: 16, 784>}, {pipeline_mode = #tpu.pipeline_mode<synchronous>, transform_indices = @transform_1, window_bounds = array<i64: 784, 32>}, {pipeline_mode = #tpu.pipeline_mode<synchronous>, transform_indices = @transform_2, window_bounds = array<i64: 1, 32>}, {pipeline_mode = #tpu.pipeline_mode<synchronous>, transform_indices = @transform_3, window_bounds = array<i64: 1, 32>}, {pipeline_mode = #tpu.pipeline_mode<synchronous>, transform_indices = @transform_4, window_bounds = array<i64: 1, 32>}, {pipeline_mode = #tpu.pipeline_mode<synchronous>, transform_indices = @transform_5, window_bounds = array<i64: 1, 32>}, {pipeline_mode = #tpu.pipeline_mode<synchronous>, transform_indices = @transform_6, window_bounds = array<i64: 32, 32>}, {pipeline_mode = #tpu.pipeline_mode<synchronous>, transform_indices = @transform_7, window_bounds = array<i64: 1, 32>}, {pipeline_mode = #tpu.pipeline_mode<synchronous>, transform_indices = @transform_8, window_bounds = array<i64: 1, 32>}, {pipeline_mode = #tpu.pipeline_mode<synchronous>, transform_indices = @transform_9, window_bounds = array<i64: 1, 32>}, {pipeline_mode = #tpu.pipeline_mode<synchronous>, transform_indices = @transform_10, window_bounds = array<i64: 1, 32>}, {pipeline_mode = #tpu.pipeline_mode<synchronous>, transform_indices = @transform_11, window_bounds = array<i64: 32, 128>}, {pipeline_mode = #tpu.pipeline_mode<synchronous>, transform_indices = @transform_12, window_bounds = array<i64: 1, 128>}, {transform_indices = @transform_13, window_bounds = array<i64: 16, 128>}]} {
    %c0 = arith.constant 0 : index
    %c0_0 = arith.constant 0 : index
    %0 = vector.load %arg1[%c0, %c0_0] : memref<16x784xbf16, #tpu.memory_space<vmem>>, vector<16x784xbf16>
    %c0_1 = arith.constant 0 : index
    %c0_2 = arith.constant 0 : index
    %1 = vector.load %arg2[%c0_1, %c0_2] : memref<784x32xbf16, #tpu.memory_space<vmem>>, vector<784x32xbf16>
    %cst = arith.constant dense<0.000000e+00> : vector<16x32xf32>
    %2 = tpu.matmul %0, %1, %cst {dimension_numbers = #tpu.dot_dimension_numbers<[1], [0], [0], [1], [0, 0, 1, 1], [], []>} : vector<16x784xbf16>, vector<784x32xbf16>, vector<16x32xf32> -> vector<16x32xf32>
    %c0_3 = arith.constant 0 : index
    %c0_4 = arith.constant 0 : index
    %3 = vector.load %arg3[%c0_3, %c0_4] : memref<1x32xf32, #tpu.memory_space<vmem>>, vector<1x32xf32>
    %4 = vector.broadcast %3 : vector<1x32xf32> to vector<16x32xf32>
    %5 = arith.addf %2, %4 : vector<16x32xf32>
    %cst_5 = arith.constant 0.000000e+00 : f32
    %6 = vector.broadcast %cst_5 : f32 to vector<16x32xf32>
    %7 = arith.maximumf %5, %6 : vector<16x32xf32>
    %c0_6 = arith.constant 0 : index
    %c0_7 = arith.constant 0 : index
    %8 = vector.load %arg4[%c0_6, %c0_7] : memref<1x32xf32, #tpu.memory_space<vmem>>, vector<1x32xf32>
    %9 = vector.broadcast %8 : vector<1x32xf32> to vector<16x32xf32>
    %10 = arith.mulf %7, %9 : vector<16x32xf32>
    %c0_8 = arith.constant 0 : index
    %c0_9 = arith.constant 0 : index
    %11 = vector.load %arg5[%c0_8, %c0_9] : memref<1x32xf32, #tpu.memory_space<vmem>>, vector<1x32xf32>
    %12 = vector.broadcast %11 : vector<1x32xf32> to vector<16x32xf32>
    %13 = arith.mulf %5, %12 : vector<16x32xf32>
    %14 = arith.addf %10, %13 : vector<16x32xf32>
    %c0_10 = arith.constant 0 : index
    %c0_11 = arith.constant 0 : index
    %15 = vector.load %arg6[%c0_10, %c0_11] : memref<1x32xf32, #tpu.memory_space<vmem>>, vector<1x32xf32>
    %16 = vector.broadcast %15 : vector<1x32xf32> to vector<16x32xf32>
    %17 = arith.addf %14, %16 : vector<16x32xf32>
    %18 = arith.truncf %17 : vector<16x32xf32> to vector<16x32xbf16>
    %c0_12 = arith.constant 0 : index
    %c0_13 = arith.constant 0 : index
    %19 = vector.load %arg7[%c0_12, %c0_13] : memref<32x32xbf16, #tpu.memory_space<vmem>>, vector<32x32xbf16>
    %cst_14 = arith.constant dense<0.000000e+00> : vector<16x32xf32>
    %20 = tpu.matmul %18, %19, %cst_14 {dimension_numbers = #tpu.dot_dimension_numbers<[1], [0], [0], [1], [0, 0, 1, 1], [], []>} : vector<16x32xbf16>, vector<32x32xbf16>, vector<16x32xf32> -> vector<16x32xf32>
    %c0_15 = arith.constant 0 : index
    %c0_16 = arith.constant 0 : index
    %21 = vector.load %arg8[%c0_15, %c0_16] : memref<1x32xf32, #tpu.memory_space<vmem>>, vector<1x32xf32>
    %22 = vector.broadcast %21 : vector<1x32xf32> to vector<16x32xf32>
    %23 = arith.addf %20, %22 : vector<16x32xf32>
    %cst_17 = arith.constant 0.000000e+00 : f32
    %24 = vector.broadcast %cst_17 : f32 to vector<16x32xf32>
    %25 = arith.maximumf %23, %24 : vector<16x32xf32>
    %c0_18 = arith.constant 0 : index
    %c0_19 = arith.constant 0 : index
    %26 = vector.load %arg9[%c0_18, %c0_19] : memref<1x32xf32, #tpu.memory_space<vmem>>, vector<1x32xf32>
    %27 = vector.broadcast %26 : vector<1x32xf32> to vector<16x32xf32>
    %28 = arith.mulf %25, %27 : vector<16x32xf32>
    %c0_20 = arith.constant 0 : index
    %c0_21 = arith.constant 0 : index
    %29 = vector.load %arg10[%c0_20, %c0_21] : memref<1x32xf32, #tpu.memory_space<vmem>>, vector<1x32xf32>
    %30 = vector.broadcast %29 : vector<1x32xf32> to vector<16x32xf32>
    %31 = arith.mulf %23, %30 : vector<16x32xf32>
    %32 = arith.addf %28, %31 : vector<16x32xf32>
    %c0_22 = arith.constant 0 : index
    %c0_23 = arith.constant 0 : index
    %33 = vector.load %arg11[%c0_22, %c0_23] : memref<1x32xf32, #tpu.memory_space<vmem>>, vector<1x32xf32>
    %34 = vector.broadcast %33 : vector<1x32xf32> to vector<16x32xf32>
    %35 = arith.addf %32, %34 : vector<16x32xf32>
    %36 = arith.truncf %35 : vector<16x32xf32> to vector<16x32xbf16>
    %c0_24 = arith.constant 0 : index
    %c0_25 = arith.constant 0 : index
    %37 = vector.load %arg12[%c0_24, %c0_25] : memref<32x128xbf16, #tpu.memory_space<vmem>>, vector<32x128xbf16>
    %cst_26 = arith.constant dense<0.000000e+00> : vector<16x128xf32>
    %38 = tpu.matmul %36, %37, %cst_26 {dimension_numbers = #tpu.dot_dimension_numbers<[1], [0], [0], [1], [0, 0, 1, 1], [], []>} : vector<16x32xbf16>, vector<32x128xbf16>, vector<16x128xf32> -> vector<16x128xf32>
    %c0_27 = arith.constant 0 : index
    %c0_28 = arith.constant 0 : index
    %39 = vector.load %arg13[%c0_27, %c0_28] : memref<1x128xf32, #tpu.memory_space<vmem>>, vector<1x128xf32>
    %40 = vector.broadcast %39 : vector<1x128xf32> to vector<16x128xf32>
    %41 = arith.addf %38, %40 : vector<16x128xf32>
    %c0_29 = arith.constant 0 : index
    %c0_30 = arith.constant 0 : index
    %42 = vector.load %arg14[%c0_29, %c0_30] : memref<16x128xf32, #tpu.memory_space<vmem>>, vector<16x128xf32>
    tpu.vector_store %arg14[%c0_29, %c0_30], %41 {strides = array<i32>} : memref<16x128xf32, #tpu.memory_space<vmem>>, vector<16x128xf32>,
    return
  }
  func.func @transform_0(%arg0: i32) -> (i32, i32) {
    %c0_i32 = arith.constant 0 : i32
    %c0_i32_0 = arith.constant 0 : i32
    return %arg0, %c0_i32 : i32, i32
  }
  func.func @transform_1(%arg0: i32) -> (i32, i32) {
    %c0_i32 = arith.constant 0 : i32
    %c0_i32_0 = arith.constant 0 : i32
    %c0_i32_1 = arith.constant 0 : i32
    return %c0_i32, %c0_i32_0 : i32, i32
  }
  func.func @transform_2(%arg0: i32) -> (i32, i32) {
    %c0_i32 = arith.constant 0 : i32
    %c0_i32_0 = arith.constant 0 : i32
    %c0_i32_1 = arith.constant 0 : i32
    return %c0_i32, %c0_i32_0 : i32, i32
  }
  func.func @transform_3(%arg0: i32) -> (i32, i32) {
    %c0_i32 = arith.constant 0 : i32
    %c0_i32_0 = arith.constant 0 : i32
    %c0_i32_1 = arith.constant 0 : i32
    return %c0_i32, %c0_i32_0 : i32, i32
  }
  func.func @transform_4(%arg0: i32) -> (i32, i32) {
    %c0_i32 = arith.constant 0 : i32
    %c0_i32_0 = arith.constant 0 : i32
    %c0_i32_1 = arith.constant 0 : i32
    return %c0_i32, %c0_i32_0 : i32, i32
  }
  func.func @transform_5(%arg0: i32) -> (i32, i32) {
    %c0_i32 = arith.constant 0 : i32
    %c0_i32_0 = arith.constant 0 : i32
    %c0_i32_1 = arith.constant 0 : i32
    return %c0_i32, %c0_i32_0 : i32, i32
  }
  func.func @transform_6(%arg0: i32) -> (i32, i32) {
    %c0_i32 = arith.constant 0 : i32
    %c0_i32_0 = arith.constant 0 : i32
    %c0_i32_1 = arith.constant 0 : i32
    return %c0_i32, %c0_i32_0 : i32, i32
  }
  func.func @transform_7(%arg0: i32) -> (i32, i32) {
    %c0_i32 = arith.constant 0 : i32
    %c0_i32_0 = arith.constant 0 : i32
    %c0_i32_1 = arith.constant 0 : i32
    return %c0_i32, %c0_i32_0 : i32, i32
  }
  func.func @transform_8(%arg0: i32) -> (i32, i32) {
    %c0_i32 = arith.constant 0 : i32
    %c0_i32_0 = arith.constant 0 : i32
    %c0_i32_1 = arith.constant 0 : i32
    return %c0_i32, %c0_i32_0 : i32, i32
  }
  func.func @transform_9(%arg0: i32) -> (i32, i32) {
    %c0_i32 = arith.constant 0 : i32
    %c0_i32_0 = arith.constant 0 : i32
    %c0_i32_1 = arith.constant 0 : i32
    return %c0_i32, %c0_i32_0 : i32, i32
  }
  func.func @transform_10(%arg0: i32) -> (i32, i32) {
    %c0_i32 = arith.constant 0 : i32
    %c0_i32_0 = arith.constant 0 : i32
    %c0_i32_1 = arith.constant 0 : i32
    return %c0_i32, %c0_i32_0 : i32, i32
  }
  func.func @transform_11(%arg0: i32) -> (i32, i32) {
    %c0_i32 = arith.constant 0 : i32
    %c0_i32_0 = arith.constant 0 : i32
    %c0_i32_1 = arith.constant 0 : i32
    return %c0_i32, %c0_i32_0 : i32, i32
  }
  func.func @transform_12(%arg0: i32) -> (i32, i32) {
    %c0_i32 = arith.constant 0 : i32
    %c0_i32_0 = arith.constant 0 : i32
    %c0_i32_1 = arith.constant 0 : i32
    return %c0_i32, %c0_i32_0 : i32, i32
  }
  func.func @transform_13(%arg0: i32) -> (i32, i32) {
    %c0_i32 = arith.constant 0 : i32
    %c0_i32_0 = arith.constant 0 : i32
    return %arg0, %c0_i32 : i32, i32
  }
}

</mosaic_0001>

<llo_original>
// kernel: tpu_custom_call.1
$region0: #{tpu_custom_call.1}
  #allocation0 [shape = 'u32[]', space=smem, size = 0x4, offset = 0x4, fixed_abs, tag = 'smem constant byte address 0x4 - core index']
  #allocation1 [shape = 'u32[144,128]{1,0:T(1,128)}', space=vmem, size = 0x12000, scoped, tag = 'internal scratch']
  %s0 = inlined_call_operand.vmem [shape: bf16[16,784], index: 0, kind: input, shape index: {}]
  %s1 = inlined_call_operand.vmem [shape: bf16[784,32], index: 1, kind: input, shape index: {}]
  %s2 = inlined_call_operand.vmem [shape: f32[1,32], index: 2, kind: input, shape index: {}]
  %s3 = inlined_call_operand.vmem [shape: f32[1,32], index: 3, kind: input, shape index: {}]
  %s4 = inlined_call_operand.vmem [shape: f32[1,32], index: 4, kind: input, shape index: {}]
  %s5 = inlined_call_operand.vmem [shape: f32[1,32], index: 5, kind: input, shape index: {}]
  %s6 = inlined_call_operand.vmem [shape: bf16[32,32], index: 6, kind: input, shape index: {}]
  %s7 = inlined_call_operand.vmem [shape: f32[1,32], index: 7, kind: input, shape index: {}]
  %s8 = inlined_call_operand.vmem [shape: f32[1,32], index: 8, kind: input, shape index: {}]
  %s9 = inlined_call_operand.vmem [shape: f32[1,32], index: 9, kind: input, shape index: {}]
  %s10 = inlined_call_operand.vmem [shape: f32[1,32], index: 10, kind: input, shape index: {}]
  %s11 = inlined_call_operand.vmem [shape: bf16[32,128], index: 11, kind: input, shape index: {}]
  %s12 = inlined_call_operand.vmem [shape: f32[1,128], index: 12, kind: input, shape index: {}]
  %s13 = inlined_call_operand.hbm [shape: f32[16,128], index: 13, kind: output, shape index: {}]
  %s14 = sld [smem:[#allocation0]]
  $region62: #{tpu_custom_call.1} parent=0
    _
  %s16 = ssub.s32 1, %s14
  %s17 = scalar_select 0, %s16, %s14
  $region1: #{tpu_custom_call.1} parent=0
    #allocation2 [shape = 'u8[8192]{0}', space=vmem, size = 0x2000, scoped, tag = 'output window, operand 0, single buffered']
    #allocation3 [shape = 's32[1]{0}', space=sflag, size = 0x4, scoped, tag = 'scoped memory for tpu_custom_call.1']
    %18 = vsyncpa [#allocation3], 0
    // Predicated region
    $region2: #{tpu_custom_call.1} parent=1 // pred_check
      _
    $region3: #{tpu_custom_call.1} parent=1 // pred_check_branch
      %20 = sbr.rel (0) target = $region5
    $region4: #{tpu_custom_call.1} parent=1 // pred_region
      _
    $region5: #{tpu_custom_call.1} parent=1 // pred_fallthru
      _
    // Predicated region
    $region6: #{tpu_custom_call.1} parent=1 // pred_check
      _
    $region7: #{tpu_custom_call.1} parent=1 // pred_check_branch
      %22 = sbr.rel (0) target = $region9
    $region8: #{tpu_custom_call.1} parent=1 // pred_region
      _
    $region9: #{tpu_custom_call.1} parent=1 // pred_fallthru
      _
    // Predicated region
    $region10: #{tpu_custom_call.1} parent=1 // pred_check
      _
    $region11: #{tpu_custom_call.1} parent=1 // pred_check_branch
      %24 = sbr.rel (0) target = $region13
    $region12: #{tpu_custom_call.1} parent=1 // pred_region
      _
    $region13: #{tpu_custom_call.1} parent=1 // pred_fallthru
      _
    // Predicated region
    $region14: #{tpu_custom_call.1} parent=1 // pred_check
      _
    $region15: #{tpu_custom_call.1} parent=1 // pred_check_branch
      %26 = sbr.rel (0) target = $region17
    $region16: #{tpu_custom_call.1} parent=1 // pred_region
      _
    $region17: #{tpu_custom_call.1} parent=1 // pred_fallthru
      _
    // Predicated region
    $region18: #{tpu_custom_call.1} parent=1 // pred_check
      _
    $region19: #{tpu_custom_call.1} parent=1 // pred_check_branch
      %28 = sbr.rel (0) target = $region21
    $region20: #{tpu_custom_call.1} parent=1 // pred_region
      _
    $region21: #{tpu_custom_call.1} parent=1 // pred_fallthru
      _
    // Predicated region
    $region22: #{tpu_custom_call.1} parent=1 // pred_check
      _
    $region23: #{tpu_custom_call.1} parent=1 // pred_check_branch
      %30 = sbr.rel (0) target = $region25
    $region24: #{tpu_custom_call.1} parent=1 // pred_region
      _
    $region25: #{tpu_custom_call.1} parent=1 // pred_fallthru
      _
    // Predicated region
    $region26: #{tpu_custom_call.1} parent=1 // pred_check
      _
    $region27: #{tpu_custom_call.1} parent=1 // pred_check_branch
      %32 = sbr.rel (0) target = $region29
    $region28: #{tpu_custom_call.1} parent=1 // pred_region
      _
    $region29: #{tpu_custom_call.1} parent=1 // pred_fallthru
      _
    // Predicated region
    $region30: #{tpu_custom_call.1} parent=1 // pred_check
      _
    $region31: #{tpu_custom_call.1} parent=1 // pred_check_branch
      %34 = sbr.rel (0) target = $region33
    $region32: #{tpu_custom_call.1} parent=1 // pred_region
      _
    $region33: #{tpu_custom_call.1} parent=1 // pred_fallthru
      _
    // Predicated region
    $region34: #{tpu_custom_call.1} parent=1 // pred_check
      _
    $region35: #{tpu_custom_call.1} parent=1 // pred_check_branch
      %36 = sbr.rel (0) target = $region37
    $region36: #{tpu_custom_call.1} parent=1 // pred_region
      _
    $region37: #{tpu_custom_call.1} parent=1 // pred_fallthru
      _
    // Predicated region
    $region38: #{tpu_custom_call.1} parent=1 // pred_check
      _
    $region39: #{tpu_custom_call.1} parent=1 // pred_check_branch
      %38 = sbr.rel (0) target = $region41
    $region40: #{tpu_custom_call.1} parent=1 // pred_region
      _
    $region41: #{tpu_custom_call.1} parent=1 // pred_fallthru
      _
    // Predicated region
    $region42: #{tpu_custom_call.1} parent=1 // pred_check
      _
    $region43: #{tpu_custom_call.1} parent=1 // pred_check_branch
      %40 = sbr.rel (0) target = $region45
    $region44: #{tpu_custom_call.1} parent=1 // pred_region
      _
    $region45: #{tpu_custom_call.1} parent=1 // pred_fallthru
      _
    // Predicated region
    $region46: #{tpu_custom_call.1} parent=1 // pred_check
      _
    $region47: #{tpu_custom_call.1} parent=1 // pred_check_branch
      %42 = sbr.rel (0) target = $region49
    $region48: #{tpu_custom_call.1} parent=1 // pred_region
      _
    $region49: #{tpu_custom_call.1} parent=1 // pred_fallthru
      _
    // Predicated region
    $region50: #{tpu_custom_call.1} parent=1 // pred_check
      _
    $region51: #{tpu_custom_call.1} parent=1 // pred_check_branch
      %44 = sbr.rel (0) target = $region53
    $region52: #{tpu_custom_call.1} parent=1 // pred_region
      _
    $region53: #{tpu_custom_call.1} parent=1 // pred_fallthru
      _
    %v46 = vld [vmem:[%s0] sm:$0xff]
    %v47 = vld [vmem:[%s0 + $0x8] sm:$0xff]
    %v48 = vld [vmem:[%s0 + $0x10] sm:$0xff]
    %v49 = vld [vmem:[%s0 + $0x18] sm:$0xf]
    %v50 = vld [vmem:[%s0 + $0x1c] sm:$0xff]
    %v51 = vld [vmem:[%s0 + $0x24] sm:$0xff]
    %v52 = vld [vmem:[%s0 + $0x2c] sm:$0xff]
    %v53 = vld [vmem:[%s0 + $0x34] sm:$0xf]
    %v54 = vld [vmem:[%s1] sm:$0xf]
    %v55 = vld [vmem:[%s1 + $0x4] sm:$0xf]
    %v56 = vld [vmem:[%s1 + $0x8] sm:$0xf]
    %v57 = vld [vmem:[%s1 + $0xc] sm:$0xf]
    %v58 = vld [vmem:[%s1 + $0x10] sm:$0xf]
    %v59 = vld [vmem:[%s1 + $0x14] sm:$0xf]
    %v60 = vld [vmem:[%s1 + $0x18] sm:$0xf]
    %v61 = vld [vmem:[%s1 + $0x1c] sm:$0xf]
    %v62 = vld [vmem:[%s1 + $0x20] sm:$0xf]
    %v63 = vld [vmem:[%s1 + $0x24] sm:$0xf]
    %v64 = vld [vmem:[%s1 + $0x28] sm:$0xf]
    %v65 = vld [vmem:[%s1 + $0x2c] sm:$0xf]
    %v66 = vld [vmem:[%s1 + $0x30] sm:$0xf]
    %v67 = vld [vmem:[%s1 + $0x34] sm:$0xf]
    %v68 = vld [vmem:[%s1 + $0x38] sm:$0xf]
    %v69 = vld [vmem:[%s1 + $0x3c] sm:$0xf]
    %v70 = vld [vmem:[%s1 + $0x40] sm:$0xf]
    %v71 = vld [vmem:[%s1 + $0x44] sm:$0xf]
    %v72 = vld [vmem:[%s1 + $0x48] sm:$0xf]
    %v73 = vld [vmem:[%s1 + $0x4c] sm:$0xf]
    %v74 = vld [vmem:[%s1 + $0x50] sm:$0xf]
    %v75 = vld [vmem:[%s1 + $0x54] sm:$0xf]
    %v76 = vld [vmem:[%s1 + $0x58] sm:$0xf]
    %v77 = vld [vmem:[%s1 + $0x5c] sm:$0xf]
    %v78 = vld [vmem:[%s1 + $0x60] sm:$0xf]
    %v79 = vld [vmem:[%s1 + $0x64] sm:$0xf]
    %v80 = vld [vmem:[%s1 + $0x68] sm:$0xf]
    %v81 = vld [vmem:[%s1 + $0x6c] sm:$0xf]
    %v82 = vld [vmem:[%s1 + $0x70] sm:$0xf]
    %v83 = vld [vmem:[%s1 + $0x74] sm:$0xf]
    %v84 = vld [vmem:[%s1 + $0x78] sm:$0xf]
    %v85 = vld [vmem:[%s1 + $0x7c] sm:$0xf]
    %v86 = vld [vmem:[%s1 + $0x80] sm:$0xf]
    %v87 = vld [vmem:[%s1 + $0x84] sm:$0xf]
    %v88 = vld [vmem:[%s1 + $0x88] sm:$0xf]
    %v89 = vld [vmem:[%s1 + $0x8c] sm:$0xf]
    %v90 = vld [vmem:[%s1 + $0x90] sm:$0xf]
    %v91 = vld [vmem:[%s1 + $0x94] sm:$0xf]
    %v92 = vld [vmem:[%s1 + $0x98] sm:$0xf]
    %v93 = vld [vmem:[%s1 + $0x9c] sm:$0xf]
    %v94 = vld [vmem:[%s1 + $0xa0] sm:$0xf]
    %v95 = vld [vmem:[%s1 + $0xa4] sm:$0xf]
    %v96 = vld [vmem:[%s1 + $0xa8] sm:$0xf]
    %v97 = vld [vmem:[%s1 + $0xac] sm:$0xf]
    %v98 = vld [vmem:[%s1 + $0xb0] sm:$0xf]
    %v99 = vld [vmem:[%s1 + $0xb4] sm:$0xf]
    %v100 = vld [vmem:[%s1 + $0xb8] sm:$0xf]
    %v101 = vld [vmem:[%s1 + $0xbc] sm:$0xf]
    %v102 = vld [vmem:[%s1 + $0xc0] sm:$0xf]
    %v103 = vld [vmem:[%s1 + $0xc4] sm:$0xf]
    %v104 = vld [vmem:[%s1 + $0xc8] sm:$0xf]
    %v105 = vld [vmem:[%s1 + $0xcc] sm:$0xf]
    %v106 = vld [vmem:[%s1 + $0xd0] sm:$0xf]
    %v107 = vld [vmem:[%s1 + $0xd4] sm:$0xf]
    %v108 = vld [vmem:[%s1 + $0xd8] sm:$0xf]
    %v109 = vld [vmem:[%s1 + $0xdc] sm:$0xf]
    %v110 = vld [vmem:[%s1 + $0xe0] sm:$0xf]
    %v111 = vld [vmem:[%s1 + $0xe4] sm:$0xf]
    %v112 = vld [vmem:[%s1 + $0xe8] sm:$0xf]
    %v113 = vld [vmem:[%s1 + $0xec] sm:$0xf]
    %v114 = vld [vmem:[%s1 + $0xf0] sm:$0xf]
    %v115 = vld [vmem:[%s1 + $0xf4] sm:$0xf]
    %v116 = vld [vmem:[%s1 + $0xf8] sm:$0xf]
    %v117 = vld [vmem:[%s1 + $0xfc] sm:$0xf]
    %v118 = vld [vmem:[%s1 + $0x100] sm:$0xf]
    %v119 = vld [vmem:[%s1 + $0x104] sm:$0xf]
    %v120 = vld [vmem:[%s1 + $0x108] sm:$0xf]
    %v121 = vld [vmem:[%s1 + $0x10c] sm:$0xf]
    %v122 = vld [vmem:[%s1 + $0x110] sm:$0xf]
    %v123 = vld [vmem:[%s1 + $0x114] sm:$0xf]
    %v124 = vld [vmem:[%s1 + $0x118] sm:$0xf]
    %v125 = vld [vmem:[%s1 + $0x11c] sm:$0xf]
    %v126 = vld [vmem:[%s1 + $0x120] sm:$0xf]
    %v127 = vld [vmem:[%s1 + $0x124] sm:$0xf]
    %v128 = vld [vmem:[%s1 + $0x128] sm:$0xf]
    %v129 = vld [vmem:[%s1 + $0x12c] sm:$0xf]
    %v130 = vld [vmem:[%s1 + $0x130] sm:$0xf]
    %v131 = vld [vmem:[%s1 + $0x134] sm:$0xf]
    %v132 = vld [vmem:[%s1 + $0x138] sm:$0xf]
    %v133 = vld [vmem:[%s1 + $0x13c] sm:$0xf]
    %v134 = vld [vmem:[%s1 + $0x140] sm:$0xf]
    %v135 = vld [vmem:[%s1 + $0x144] sm:$0xf]
    %v136 = vld [vmem:[%s1 + $0x148] sm:$0xf]
    %v137 = vld [vmem:[%s1 + $0x14c] sm:$0xf]
    %v138 = vld [vmem:[%s1 + $0x150] sm:$0xf]
    %v139 = vld [vmem:[%s1 + $0x154] sm:$0xf]
    %v140 = vld [vmem:[%s1 + $0x158] sm:$0xf]
    %v141 = vld [vmem:[%s1 + $0x15c] sm:$0xf]
    %v142 = vld [vmem:[%s1 + $0x160] sm:$0xf]
    %v143 = vld [vmem:[%s1 + $0x164] sm:$0xf]
    %v144 = vld [vmem:[%s1 + $0x168] sm:$0xf]
    %v145 = vld [vmem:[%s1 + $0x16c] sm:$0xf]
    %v146 = vld [vmem:[%s1 + $0x170] sm:$0xf]
    %v147 = vld [vmem:[%s1 + $0x174] sm:$0xf]
    %v148 = vld [vmem:[%s1 + $0x178] sm:$0xf]
    %v149 = vld [vmem:[%s1 + $0x17c] sm:$0xf]
    %v150 = vld [vmem:[%s1 + $0x180] sm:$0xf]
    %v151 = vld [vmem:[%s1 + $0x184] sm:$0xf]
    %v152 = vld [vmem:[%s2] sm:$0x1]
    %v154 = vlaneseq
    %v155 = vshrl.u32 %v154, 7
    %v156 = vsub.s32 0, %v155
    %v157 = vrot.slane %v152, %v156
    %v167 = vunpack.c.l.b16 %v46
    %v168 = vunpack.c.h.b16 %v46
    %v169 = vunpack.c.l.b16 %v47
    %v170 = vunpack.c.h.b16 %v47
    %v171 = vunpack.c.l.b16 %v48
    %v172 = vunpack.c.h.b16 %v48
    %v173 = vunpack.c.l.b16 %v49
    %v174 = vunpack.c.l.b16 %v50
    %v175 = vunpack.c.h.b16 %v50
    %v176 = vunpack.c.l.b16 %v51
    %v177 = vunpack.c.h.b16 %v51
    %v178 = vunpack.c.l.b16 %v52
    %v179 = vunpack.c.h.b16 %v52
    %v180 = vunpack.c.l.b16 %v53
    %v181 = vpack.c.b16 %v174, %v167
    %v182 = vpack.c.b16 %v175, %v168
    %v183 = vpack.c.b16 %v176, %v169
    %v184 = vpack.c.b16 %v177, %v170
    %v185 = vpack.c.b16 %v178, %v171
    %v186 = vpack.c.b16 %v179, %v172
    %v187 = vpack.c.b16 %v180, %v173
    %v292 = vunpack.c.l.b16 %v54
    %v293 = vunpack.c.l.b16 %v55
    %v294 = vunpack.c.l.b16 %v56
    %v295 = vunpack.c.l.b16 %v57
    %v296 = vunpack.c.l.b16 %v58
    %v297 = vunpack.c.l.b16 %v59
    %v298 = vunpack.c.l.b16 %v60
    %v299 = vunpack.c.l.b16 %v61
    %v300 = vunpack.c.l.b16 %v62
    %v301 = vunpack.c.l.b16 %v63
    %v302 = vunpack.c.l.b16 %v64
    %v303 = vunpack.c.l.b16 %v65
    %v304 = vunpack.c.l.b16 %v66
    %v305 = vunpack.c.l.b16 %v67
    %v306 = vunpack.c.l.b16 %v68
    %v307 = vunpack.c.l.b16 %v69
    %v308 = vunpack.c.l.b16 %v70
    %v309 = vunpack.c.l.b16 %v71
    %v310 = vunpack.c.l.b16 %v72
    %v311 = vunpack.c.l.b16 %v73
    %v312 = vunpack.c.l.b16 %v74
    %v313 = vunpack.c.l.b16 %v75
    %v314 = vunpack.c.l.b16 %v76
    %v315 = vunpack.c.l.b16 %v77
    %v316 = vunpack.c.l.b16 %v78
    %v317 = vunpack.c.l.b16 %v79
    %v318 = vunpack.c.l.b16 %v80
    %v319 = vunpack.c.l.b16 %v81
    %v320 = vunpack.c.l.b16 %v82
    %v321 = vunpack.c.l.b16 %v83
    %v322 = vunpack.c.l.b16 %v84
    %v323 = vunpack.c.l.b16 %v85
    %v324 = vunpack.c.l.b16 %v86
    %v325 = vunpack.c.l.b16 %v87
    %v326 = vunpack.c.l.b16 %v88
    %v327 = vunpack.c.l.b16 %v89
    %v328 = vunpack.c.l.b16 %v90
    %v329 = vunpack.c.l.b16 %v91
    %v330 = vunpack.c.l.b16 %v92
    %v331 = vunpack.c.l.b16 %v93
    %v332 = vunpack.c.l.b16 %v94
    %v333 = vunpack.c.l.b16 %v95
    %v334 = vunpack.c.l.b16 %v96
    %v335 = vunpack.c.l.b16 %v97
    %v336 = vunpack.c.l.b16 %v98
    %v337 = vunpack.c.l.b16 %v99
    %v338 = vunpack.c.l.b16 %v100
    %v339 = vunpack.c.l.b16 %v101
    %v340 = vunpack.c.l.b16 %v102
    %v341 = vunpack.c.l.b16 %v103
    %v342 = vunpack.c.l.b16 %v104
    %v343 = vunpack.c.l.b16 %v105
    %v344 = vunpack.c.l.b16 %v106
    %v345 = vunpack.c.l.b16 %v107
    %v346 = vunpack.c.l.b16 %v108
    %v347 = vunpack.c.l.b16 %v109
    %v348 = vunpack.c.l.b16 %v110
    %v349 = vunpack.c.l.b16 %v111
    %v350 = vunpack.c.l.b16 %v112
    %v351 = vunpack.c.l.b16 %v113
    %v352 = vunpack.c.l.b16 %v114
    %v353 = vunpack.c.l.b16 %v115
    %v354 = vunpack.c.l.b16 %v116
    %v355 = vunpack.c.l.b16 %v117
    %v356 = vunpack.c.l.b16 %v118
    %v357 = vunpack.c.l.b16 %v119
    %v358 = vunpack.c.l.b16 %v120
    %v359 = vunpack.c.l.b16 %v121
    %v360 = vunpack.c.l.b16 %v122
    %v361 = vunpack.c.l.b16 %v123
    %v362 = vunpack.c.l.b16 %v124
    %v363 = vunpack.c.l.b16 %v125
    %v364 = vunpack.c.l.b16 %v126
    %v365 = vunpack.c.l.b16 %v127
    %v366 = vunpack.c.l.b16 %v128
    %v367 = vunpack.c.l.b16 %v129
    %v368 = vunpack.c.l.b16 %v130
    %v369 = vunpack.c.l.b16 %v131
    %v370 = vunpack.c.l.b16 %v132
    %v371 = vunpack.c.l.b16 %v133
    %v372 = vunpack.c.l.b16 %v134
    %v373 = vunpack.c.l.b16 %v135
    %v374 = vunpack.c.l.b16 %v136
    %v375 = vunpack.c.l.b16 %v137
    %v376 = vunpack.c.l.b16 %v138
    %v377 = vunpack.c.l.b16 %v139
    %v378 = vunpack.c.l.b16 %v140
    %v379 = vunpack.c.l.b16 %v141
    %v380 = vunpack.c.l.b16 %v142
    %v381 = vunpack.c.l.b16 %v143
    %v382 = vunpack.c.l.b16 %v144
    %v383 = vunpack.c.l.b16 %v145
    %v384 = vunpack.c.l.b16 %v146
    %v385 = vunpack.c.l.b16 %v147
    %v386 = vunpack.c.l.b16 %v148
    %v387 = vunpack.c.l.b16 %v149
    %v388 = vunpack.c.l.b16 %v150
    %v389 = vunpack.c.l.b16 %v151
    %v390 = vpack.c.b16 %v293, %v292
    %v391 = vpack.c.b16 %v295, %v294
    %v392 = vpack.c.b16 %v297, %v296
    %v393 = vpack.c.b16 %v299, %v298
    %v394 = vpack.c.b16 %v301, %v300
    %v395 = vpack.c.b16 %v303, %v302
    %v396 = vpack.c.b16 %v305, %v304
    %v397 = vpack.c.b16 %v307, %v306
    %v398 = vpack.c.b16 %v309, %v308
    %v399 = vpack.c.b16 %v311, %v310
    %v400 = vpack.c.b16 %v313, %v312
    %v401 = vpack.c.b16 %v315, %v314
    %v402 = vpack.c.b16 %v317, %v316
    %v403 = vpack.c.b16 %v319, %v318
    %v404 = vpack.c.b16 %v321, %v320
    %v405 = vpack.c.b16 %v323, %v322
    %v406 = vpack.c.b16 %v325, %v324
    %v407 = vpack.c.b16 %v327, %v326
    %v408 = vpack.c.b16 %v329, %v328
    %v409 = vpack.c.b16 %v331, %v330
    %v410 = vpack.c.b16 %v333, %v332
    %v411 = vpack.c.b16 %v335, %v334
    %v412 = vpack.c.b16 %v337, %v336
    %v413 = vpack.c.b16 %v339, %v338
    %v414 = vpack.c.b16 %v341, %v340
    %v415 = vpack.c.b16 %v343, %v342
    %v416 = vpack.c.b16 %v345, %v344
    %v417 = vpack.c.b16 %v347, %v346
    %v418 = vpack.c.b16 %v349, %v348
    %v419 = vpack.c.b16 %v351, %v350
    %v420 = vpack.c.b16 %v353, %v352
    %v421 = vpack.c.b16 %v355, %v354
    %v422 = vpack.c.b16 %v357, %v356
    %v423 = vpack.c.b16 %v359, %v358
    %v424 = vpack.c.b16 %v361, %v360
    %v425 = vpack.c.b16 %v363, %v362
    %v426 = vpack.c.b16 %v365, %v364
    %v427 = vpack.c.b16 %v367, %v366
    %v428 = vpack.c.b16 %v369, %v368
    %v429 = vpack.c.b16 %v371, %v370
    %v430 = vpack.c.b16 %v373, %v372
    %v431 = vpack.c.b16 %v375, %v374
    %v432 = vpack.c.b16 %v377, %v376
    %v433 = vpack.c.b16 %v379, %v378
    %v434 = vpack.c.b16 %v381, %v380
    %v435 = vpack.c.b16 %v383, %v382
    %v436 = vpack.c.b16 %v385, %v384
    %v437 = vpack.c.b16 %v387, %v386
    %v438 = vpack.c.b16 %v389, %v388
    %vm488 = vcmask 130048
    %v490 = vsel %vm488, %v187, 0
    %492 = vmatprep.subr.bf16.mxu0 0
    %493 = vmatpush1.bf16.msra.mxu0 %v390
    %494 = vmatprep.subr.bf16.mxu0 0
    %495 = vmatpush1.bf16.msra.mxu0 %v391
    %496 = vmatprep.subr.bf16.mxu0 0
    %497 = vmatpush1.bf16.msra.mxu0 %v392
    %498 = vmatprep.subr.bf16.mxu0 0
    %499 = vmatpush1.bf16.msra.mxu0 %v393
    %500 = vmatprep.subr.bf16.mxu0 0
    %501 = vmatpush1.bf16.msra.mxu0 %v394
    %502 = vmatprep.subr.bf16.mxu0 0
    %503 = vmatpush1.bf16.msra.mxu0 %v395
    %504 = vmatprep.subr.bf16.mxu0 0
    %505 = vmatpush1.bf16.msra.mxu0 %v396
    %506 = vmatprep.subr.bf16.mxu0 0
    %507 = vmatpush1.bf16.msra.mxu0 %v397
    %508 = vmatprep.subr.bf16.mxu0 0
    %509 = vmatpush1.bf16.msra.mxu0 %v398
    %510 = vmatprep.subr.bf16.mxu0 0
    %511 = vmatpush1.bf16.msra.mxu0 %v399
    %512 = vmatprep.subr.bf16.mxu0 0
    %513 = vmatpush1.bf16.msra.mxu0 %v400
    %514 = vmatprep.subr.bf16.mxu0 0
    %515 = vmatpush1.bf16.msra.mxu0 %v401
    %516 = vmatprep.subr.bf16.mxu0 0
    %517 = vmatpush1.bf16.msra.mxu0 %v402
    %518 = vmatprep.subr.bf16.mxu0 0
    %519 = vmatpush1.bf16.msra.mxu0 %v403
    %520 = vmatprep.subr.bf16.mxu0 0
    %521 = vmatpush1.bf16.msra.mxu0 %v404
    %522 = vmatprep.subr.bf16.mxu0 0
    %523 = vmatpush1.bf16.msra.mxu0 %v405
    %524 = vmatprep.mubr.bf16.mxu0 %v182
    %525 = vmatmul.mubr.bf16.gmra.mrb[0].mxu0 %v181
    %v526 = vpop.f32.mrb[0].mxu0
    %v527 = vadd.f32 %v157, %v526
    %v528 = vpop.f32.mrb[0].mxu0
    %v529 = vpop.f32.mrb[0].mxu0
    %v530 = vadd.f32 %v157, %v529
    %v531 = vpop.f32.mrb[0].mxu0
    %532 = vdwg.mxu0
    %533 = vmatprep.subr.bf16.mxu0 0
    %534 = vmatpush1.bf16.msra.mxu0 %v406
    %535 = vmatprep.subr.bf16.mxu0 0
    %536 = vmatpush1.bf16.msra.mxu0 %v407
    %537 = vmatprep.subr.bf16.mxu0 0
    %538 = vmatpush1.bf16.msra.mxu0 %v408
    %539 = vmatprep.subr.bf16.mxu0 0
    %540 = vmatpush1.bf16.msra.mxu0 %v409
    %541 = vmatprep.subr.bf16.mxu0 0
    %542 = vmatpush1.bf16.msra.mxu0 %v410
    %543 = vmatprep.subr.bf16.mxu0 0
    %544 = vmatpush1.bf16.msra.mxu0 %v411
    %545 = vmatprep.subr.bf16.mxu0 0
    %546 = vmatpush1.bf16.msra.mxu0 %v412
    %547 = vmatprep.subr.bf16.mxu0 0
    %548 = vmatpush1.bf16.msra.mxu0 %v413
    %549 = vmatprep.subr.bf16.mxu0 0
    %550 = vmatpush1.bf16.msra.mxu0 %v414
    %551 = vmatprep.subr.bf16.mxu0 0
    %552 = vmatpush1.bf16.msra.mxu0 %v415
    %553 = vmatprep.subr.bf16.mxu0 0
    %554 = vmatpush1.bf16.msra.mxu0 %v416
    %555 = vmatprep.subr.bf16.mxu0 0
    %556 = vmatpush1.bf16.msra.mxu0 %v417
    %557 = vmatprep.subr.bf16.mxu0 0
    %558 = vmatpush1.bf16.msra.mxu0 %v418
    %559 = vmatprep.subr.bf16.mxu0 0
    %560 = vmatpush1.bf16.msra.mxu0 %v419
    %561 = vmatprep.subr.bf16.mxu0 0
    %562 = vmatpush1.bf16.msra.mxu0 %v420
    %563 = vmatprep.subr.bf16.mxu0 0
    %564 = vmatpush1.bf16.msra.mxu0 %v421
    %565 = vmatprep.mubr.bf16.mxu0 %v184
    %566 = vmatmul.mubr.bf16.gmra.mrb[0].mxu0 %v183
    %v567 = vpop.f32.mrb[0].mxu0
    %v568 = vadd.f32 %v527, %v567
    %v569 = vpop.f32.mrb[0].mxu0
    %v570 = vpop.f32.mrb[0].mxu0
    %v571 = vadd.f32 %v530, %v570
    %v572 = vpop.f32.mrb[0].mxu0
    %573 = vdwg.mxu0
    %574 = vmatprep.subr.bf16.mxu0 0
    %575 = vmatpush1.bf16.msra.mxu0 %v422
    %576 = vmatprep.subr.bf16.mxu0 0
    %577 = vmatpush1.bf16.msra.mxu0 %v423
    %578 = vmatprep.subr.bf16.mxu0 0
    %579 = vmatpush1.bf16.msra.mxu0 %v424
    %580 = vmatprep.subr.bf16.mxu0 0
    %581 = vmatpush1.bf16.msra.mxu0 %v425
    %582 = vmatprep.subr.bf16.mxu0 0
    %583 = vmatpush1.bf16.msra.mxu0 %v426
    %584 = vmatprep.subr.bf16.mxu0 0
    %585 = vmatpush1.bf16.msra.mxu0 %v427
    %586 = vmatprep.subr.bf16.mxu0 0
    %587 = vmatpush1.bf16.msra.mxu0 %v428
    %588 = vmatprep.subr.bf16.mxu0 0
    %589 = vmatpush1.bf16.msra.mxu0 %v429
    %590 = vmatprep.subr.bf16.mxu0 0
    %591 = vmatpush1.bf16.msra.mxu0 %v430
    %592 = vmatprep.subr.bf16.mxu0 0
    %593 = vmatpush1.bf16.msra.mxu0 %v431
    %594 = vmatprep.subr.bf16.mxu0 0
    %595 = vmatpush1.bf16.msra.mxu0 %v432
    %596 = vmatprep.subr.bf16.mxu0 0
    %597 = vmatpush1.bf16.msra.mxu0 %v433
    %598 = vmatprep.subr.bf16.mxu0 0
    %599 = vmatpush1.bf16.msra.mxu0 %v434
    %600 = vmatprep.subr.bf16.mxu0 0
    %601 = vmatpush1.bf16.msra.mxu0 %v435
    %602 = vmatprep.subr.bf16.mxu0 0
    %603 = vmatpush1.bf16.msra.mxu0 %v436
    %604 = vmatprep.subr.bf16.mxu0 0
    %605 = vmatpush1.bf16.msra.mxu0 %v437
    %606 = vmatprep.mubr.bf16.mxu0 %v186
    %607 = vmatmul.mubr.bf16.gmra.mrb[0].mxu0 %v185
    %v608 = vpop.f32.mrb[0].mxu0
    %v609 = vadd.f32 %v568, %v608
    %v610 = vpop.f32.mrb[0].mxu0
    %v611 = vpop.f32.mrb[0].mxu0
    %v612 = vadd.f32 %v571, %v611
    %v613 = vpop.f32.mrb[0].mxu0
    %614 = vdwg.mxu0
    %615 = vmatprep.subr.bf16.mxu0 0
    %616 = vmatpush1.bf16.msra.mxu0 %v438
    %617 = vmatprep.subr.bf16.mxu0 0
    %618 = vmatpush1.bf16.msra.mxu0 0
    %619 = vmatprep.subr.bf16.mxu0 0
    %620 = vmatpush1.bf16.msra.mxu0 0
    %621 = vmatprep.subr.bf16.mxu0 0
    %622 = vmatpush1.bf16.msra.mxu0 0
    %623 = vmatprep.subr.bf16.mxu0 0
    %624 = vmatpush1.bf16.msra.mxu0 0
    %625 = vmatprep.subr.bf16.mxu0 0
    %626 = vmatpush1.bf16.msra.mxu0 0
    %627 = vmatprep.subr.bf16.mxu0 0
    %628 = vmatpush1.bf16.msra.mxu0 0
    %629 = vmatprep.subr.bf16.mxu0 0
    %630 = vmatpush1.bf16.msra.mxu0 0
    %631 = vmatprep.subr.bf16.mxu0 0
    %632 = vmatpush1.bf16.msra.mxu0 0
    %633 = vmatprep.subr.bf16.mxu0 0
    %634 = vmatpush1.bf16.msra.mxu0 0
    %635 = vmatprep.subr.bf16.mxu0 0
    %636 = vmatpush1.bf16.msra.mxu0 0
    %637 = vmatprep.subr.bf16.mxu0 0
    %638 = vmatpush1.bf16.msra.mxu0 0
    %639 = vmatprep.subr.bf16.mxu0 0
    %640 = vmatpush1.bf16.msra.mxu0 0
    %641 = vmatprep.subr.bf16.mxu0 0
    %642 = vmatpush1.bf16.msra.mxu0 0
    %643 = vmatprep.subr.bf16.mxu0 0
    %644 = vmatpush1.bf16.msra.mxu0 0
    %645 = vmatprep.subr.bf16.mxu0 0
    %646 = vmatpush1.bf16.msra.mxu0 0
    %647 = vmatprep.mubr.bf16.mxu0 0
    %648 = vmatmul.mubr.bf16.gmra.mrb[0].mxu0 %v490
    %v649 = vpop.f32.mrb[0].mxu0
    %v650 = vadd.f32 %v609, %v649
    %v651 = vpop.f32.mrb[0].mxu0
    %v652 = vpop.f32.mrb[0].mxu0
    %v653 = vadd.f32 %v612, %v652
    %v654 = vpop.f32.mrb[0].mxu0
    %655 = vdwg.mxu0
    %v656 = vmax.f32 %v650, 0.0
    %v657 = vmax.f32 %v653, 0.0
    %v658 = vld [vmem:[%s3] sm:$0x1]
    %v660 = vlaneseq
    %v661 = vshrl.u32 %v660, 7
    %v662 = vsub.s32 0, %v661
    %v663 = vrot.slane %v658, %v662
    %v665 = vmul.f32 %v656, %v663
    %v666 = vmul.f32 %v657, %v663
    %v667 = vld [vmem:[%s4] sm:$0x1]
    %v669 = vlaneseq
    %v670 = vshrl.u32 %v669, 7
    %v671 = vsub.s32 0, %v670
    %v672 = vrot.slane %v667, %v671
    %v674 = vmul.f32 %v650, %v672
    %v675 = vmul.f32 %v653, %v672
    %v676 = vadd.f32 %v665, %v674
    %v677 = vadd.f32 %v666, %v675
    %v678 = vld [vmem:[%s5] sm:$0x1]
    %v680 = vlaneseq
    %v681 = vshrl.u32 %v680, 7
    %v682 = vsub.s32 0, %v681
    %v683 = vrot.slane %v678, %v682
    %v685 = vadd.f32 %v676, %v683
    %v686 = vadd.f32 %v677, %v683
    %v687 = vpack.c.bf16 %v686, %v685
    %v688 = vld [vmem:[%s6] sm:$0xf]
    %v689 = vld [vmem:[%s6 + $0x4] sm:$0xf]
    %v690 = vld [vmem:[%s6 + $0x8] sm:$0xf]
    %v691 = vld [vmem:[%s6 + $0xc] sm:$0xf]
    %v692 = vld [vmem:[%s7] sm:$0x1]
    %v694 = vlaneseq
    %v695 = vshrl.u32 %v694, 7
    %v696 = vsub.s32 0, %v695
    %v697 = vrot.slane %v692, %v696
    %v703 = vunpack.c.l.b16 %v688
    %v704 = vunpack.c.l.b16 %v689
    %v705 = vunpack.c.l.b16 %v690
    %v706 = vunpack.c.l.b16 %v691
    %v707 = vpack.c.b16 %v704, %v703
    %v708 = vpack.c.b16 %v706, %v705
    %vm711 = vcmask 261120
    %v713 = vsel %vm711, %v687, 0
    %715 = vmatprep.subr.bf16.mxu0 0
    %716 = vmatpush1.bf16.msra.mxu0 %v707
    %717 = vmatprep.subr.bf16.mxu0 0
    %718 = vmatpush1.bf16.msra.mxu0 %v708
    %719 = vmatprep.subr.bf16.mxu0 0
    %720 = vmatpush1.bf16.msra.mxu0 0
    %721 = vmatprep.subr.bf16.mxu0 0
    %722 = vmatpush1.bf16.msra.mxu0 0
    %723 = vmatprep.subr.bf16.mxu0 0
    %724 = vmatpush1.bf16.msra.mxu0 0
    %725 = vmatprep.subr.bf16.mxu0 0
    %726 = vmatpush1.bf16.msra.mxu0 0
    %727 = vmatprep.subr.bf16.mxu0 0
    %728 = vmatpush1.bf16.msra.mxu0 0
    %729 = vmatprep.subr.bf16.mxu0 0
    %730 = vmatpush1.bf16.msra.mxu0 0
    %731 = vmatprep.subr.bf16.mxu0 0
    %732 = vmatpush1.bf16.msra.mxu0 0
    %733 = vmatprep.subr.bf16.mxu0 0
    %734 = vmatpush1.bf16.msra.mxu0 0
    %735 = vmatprep.subr.bf16.mxu0 0
    %736 = vmatpush1.bf16.msra.mxu0 0
    %737 = vmatprep.subr.bf16.mxu0 0
    %738 = vmatpush1.bf16.msra.mxu0 0
    %739 = vmatprep.subr.bf16.mxu0 0
    %740 = vmatpush1.bf16.msra.mxu0 0
    %741 = vmatprep.subr.bf16.mxu0 0
    %742 = vmatpush1.bf16.msra.mxu0 0
    %743 = vmatprep.subr.bf16.mxu0 0
    %744 = vmatpush1.bf16.msra.mxu0 0
    %745 = vmatprep.subr.bf16.mxu0 0
    %746 = vmatpush1.bf16.msra.mxu0 0
    %747 = vmatprep.mubr.bf16.mxu0 0
    %748 = vmatmul.mubr.bf16.gmra.mrb[0].mxu0 %v713
    %v749 = vpop.f32.mrb[0].mxu0
    %v750 = vadd.f32 %v697, %v749
    %v751 = vpop.f32.mrb[0].mxu0
    %v752 = vpop.f32.mrb[0].mxu0
    %v753 = vadd.f32 %v697, %v752
    %v754 = vpop.f32.mrb[0].mxu0
    %755 = vdwg.mxu0
    %v756 = vmax.f32 %v750, 0.0
    %v757 = vmax.f32 %v753, 0.0
    %v758 = vld [vmem:[%s8] sm:$0x1]
    %v760 = vlaneseq
    %v761 = vshrl.u32 %v760, 7
    %v762 = vsub.s32 0, %v761
    %v763 = vrot.slane %v758, %v762
    %v765 = vmul.f32 %v756, %v763
    %v766 = vmul.f32 %v757, %v763
    %v767 = vld [vmem:[%s9] sm:$0x1]
    %v769 = vlaneseq
    %v770 = vshrl.u32 %v769, 7
    %v771 = vsub.s32 0, %v770
    %v772 = vrot.slane %v767, %v771
    %v774 = vmul.f32 %v750, %v772
    %v775 = vmul.f32 %v753, %v772
    %v776 = vadd.f32 %v765, %v774
    %v777 = vadd.f32 %v766, %v775
    %v778 = vld [vmem:[%s10] sm:$0x1]
    %v780 = vlaneseq
    %v781 = vshrl.u32 %v780, 7
    %v782 = vsub.s32 0, %v781
    %v783 = vrot.slane %v778, %v782
    %v785 = vadd.f32 %v776, %v783
    %v786 = vadd.f32 %v777, %v783
    %v787 = vpack.c.bf16 %v786, %v785
    %v788 = vld [vmem:[%s11] sm:$0xf]
    %v789 = vld [vmem:[%s11 + $0x4] sm:$0xf]
    %v790 = vld [vmem:[%s11 + $0x8] sm:$0xf]
    %v791 = vld [vmem:[%s11 + $0xc] sm:$0xf]
    %v792 = vld [vmem:[%s12] sm:$0x1]
    %v794 = vlaneseq
    %v795 = vshrl.u32 %v794, 7
    %v796 = vsub.s32 0, %v795
    %v797 = vrot.slane %v792, %v796
    %v803 = vunpack.c.l.b16 %v788
    %v804 = vunpack.c.l.b16 %v789
    %v805 = vunpack.c.l.b16 %v790
    %v806 = vunpack.c.l.b16 %v791
    %v807 = vpack.c.b16 %v804, %v803
    %v808 = vpack.c.b16 %v806, %v805
    %v812 = vsel %vm711, %v787, 0
    %814 = vmatprep.subr.bf16.mxu0 0
    %815 = vmatpush1.bf16.msra.mxu0 %v807
    %816 = vmatprep.subr.bf16.mxu0 0
    %817 = vmatpush1.bf16.msra.mxu0 %v808
    %818 = vmatprep.subr.bf16.mxu0 0
    %819 = vmatpush1.bf16.msra.mxu0 0
    %820 = vmatprep.subr.bf16.mxu0 0
    %821 = vmatpush1.bf16.msra.mxu0 0
    %822 = vmatprep.subr.bf16.mxu0 0
    %823 = vmatpush1.bf16.msra.mxu0 0
    %824 = vmatprep.subr.bf16.mxu0 0
    %825 = vmatpush1.bf16.msra.mxu0 0
    %826 = vmatprep.subr.bf16.mxu0 0
    %827 = vmatpush1.bf16.msra.mxu0 0
    %828 = vmatprep.subr.bf16.mxu0 0
    %829 = vmatpush1.bf16.msra.mxu0 0
    %830 = vmatprep.subr.bf16.mxu0 0
    %831 = vmatpush1.bf16.msra.mxu0 0
    %832 = vmatprep.subr.bf16.mxu0 0
    %833 = vmatpush1.bf16.msra.mxu0 0
    %834 = vmatprep.subr.bf16.mxu0 0
    %835 = vmatpush1.bf16.msra.mxu0 0
    %836 = vmatprep.subr.bf16.mxu0 0
    %837 = vmatpush1.bf16.msra.mxu0 0
    %838 = vmatprep.subr.bf16.mxu0 0
    %839 = vmatpush1.bf16.msra.mxu0 0
    %840 = vmatprep.subr.bf16.mxu0 0
    %841 = vmatpush1.bf16.msra.mxu0 0
    %842 = vmatprep.subr.bf16.mxu0 0
    %843 = vmatpush1.bf16.msra.mxu0 0
    %844 = vmatprep.subr.bf16.mxu0 0
    %845 = vmatpush1.bf16.msra.mxu0 0
    %846 = vmatprep.mubr.bf16.mxu0 0
    %847 = vmatmul.mubr.bf16.gmra.mrb[0].mxu0 %v812
    %v848 = vpop.f32.mrb[0].mxu0
    %v849 = vadd.f32 %v797, %v848
    %v850 = vpop.f32.mrb[0].mxu0
    %v851 = vpop.f32.mrb[0].mxu0
    %v852 = vadd.f32 %v797, %v851
    %v853 = vpop.f32.mrb[0].mxu0
    %854 = vdwg.mxu0
    %855 = vst [vmem:[#allocation2] sm:$0xff] %v849
    %856 = vst [vmem:[#allocation2 + $0x8] sm:$0xff] %v852
    // Predicated region
    $region54: #{tpu_custom_call.1} parent=1 // pred_check
      _
    $region55: #{tpu_custom_call.1} parent=1 // pred_check_branch
      %858 = sbr.rel (0) target = $region57
    $region56: #{tpu_custom_call.1} parent=1 // pred_region
      %s860 = ssub.s32 256, 256
      %861 = vsyncadd [#allocation3], %s860
      %s862 = sshll.u32 [#allocation2], 4
      %s863 = int_to_ptr.vmem [resolvable:$true] %s862
      %868 = dma.vmem_to_hbm [thread:$0]  %s863, 256, %s13, [#allocation3], 128, 128, 8
    $region57: #{tpu_custom_call.1} parent=1 // pred_fallthru
      _
    // Predicated region
    $region58: #{tpu_custom_call.1} parent=1 // pred_check
      _
    $region59: #{tpu_custom_call.1} parent=1 // pred_check_branch
      %870 = sbr.rel (0) target = $region61
    $region60: #{tpu_custom_call.1} parent=1 // pred_region
      %871 = dma.done [#allocation3], 256
    $region61: #{tpu_custom_call.1} parent=1 // pred_fallthru
      _
    %872 = vsyncpa [#allocation3], 1

</llo_original>
